<compile_context>
chip_gen: v7x
topology: tpu7x:2x2x1
jax: 0.10.0
libtpu: 0.0.40
codegen_flags: <defaults>
</compile_context>

<pallas_src>
import jax
import jax.numpy as jnp
from jax.experimental import pallas as pl
from jax.experimental.pallas import tpu as pltpu

CIN = 3            # input image channels
CEMB = 64          # image/text embedding dim
TXT_DIM = 512      # CLIP-style text feature dim
KH = KW = 3
K27 = CIN * KH * KW
STRIDE, PAD = 2, 1
LOGIT_SCALE = 1.0 / 16.0   # deterministic "learned" contrastive scale
LOGIT_BIAS = -1.0          # deterministic "learned" contrastive bias


# --------------------------- fused forward kernel ----------------------------
# Grid: (B, HW // tm), both axes "parallel" (megacore-shardable on v7x).
# Refs (leading batch dim squeezed away by pl.Squeezed()):
#   p_ref  : (K27, tm)    bf16  channel-major im2col patch tile (lane-dense)
#   t_ref  : (NC, CEMB)   bf16  pre-normalized text embedding for this batch
#   wc_ref : (CEMB, K27)  bf16  conv stem weight (resident, constant index)
#   bc_ref : (CEMB, 1)    f32   conv stem bias
#   o_ref  : (NC, tm)     f32   logits, lane-dense last dim
def fused_kernel(p_ref, t_ref, wc_ref, bc_ref, o_ref):
    # 1) conv stem tile: (CEMB,27)@(27,tm) -> (CEMB,tm).  N = tm keeps the MXU
    #    at full width; bf16 in / f32 accumulate.
    f = jnp.dot(wc_ref[...], p_ref[...], preferred_element_type=jnp.float32)
    f = f + bc_ref[...]                                   # per-channel bias
    f = f * jax.nn.sigmoid(f)                             # SiLU (EUP)
    # 2) L2-normalize image features over the channel axis, in-register.
    f = f * jax.lax.rsqrt(jnp.sum(f * f, axis=0, keepdims=True) + 1e-12)
    # 3) contrastive logits: (NC,CEMB)@(CEMB,tm) -> (NC,tm); both operands
    #    bf16 (unit-norm, cast error << output tolerance), f32 accumulate.
    logits = jnp.dot(t_ref[...], f.astype(jnp.bfloat16),
                     preferred_element_type=jnp.float32)
    o_ref[...] = (logits * LOGIT_SCALE + LOGIT_BIAS).astype(o_ref.dtype)


def _pick_tile(hw, tm_req, batch):
    """Largest multiple-of-128 divisor of hw that is <= tm_req (else full hw).

    Also keeps the total grid (batch * hw//tm) >= 2 so v7x's two TensorCores
    both get work (irrelevant on single-TC v5e/v6e).
    """
    if hw % 128 != 0 or tm_req < 128:
        return hw
    t = min((tm_req // 128) * 128, hw)
    while hw % t != 0:
        t -= 128
    if batch * (hw // t) < 2:
        half = hw // 2
        if half >= 128 and half % 128 == 0:
            t = half
    return t


def fused_forward(patches, t_norm, wc, bc, *, B, NC, HW, tm,
                  out_dtype=jnp.float32):
    grid = (B, HW // tm)
    # Concrete VMEM budget: double-buffered patch tile + output tile + the
    # (tiny) resident operands, plus headroom for Mosaic internal scratch.
    # Even at tm=8192, NC=80 this is only a few MiB (well inside v7x's 64 MiB),
    # so there is no reason to cap tm for VMEM.
    tile_bytes = K27 * tm * 2 + NC * tm * jnp.dtype(out_dtype).itemsize
    resident_bytes = NC * CEMB * 2 + CEMB * K27 * 2 + CEMB * 4
    vmem_limit = int(2 * tile_bytes + 2 * resident_bytes) + (8 << 20)

    return pl.pallas_call(
        fused_kernel,
        out_shape=jax.ShapeDtypeStruct((B, NC, HW), out_dtype),
        grid=grid,
        in_specs=[
            pl.BlockSpec((pl.Squeezed(), K27, tm), lambda b, j: (b, 0, j)),
            pl.BlockSpec((pl.Squeezed(), NC, CEMB), lambda b, j: (b, 0, 0)),
            pl.BlockSpec((CEMB, K27), lambda b, j: (0, 0)),
            pl.BlockSpec((CEMB, 1), lambda b, j: (0, 0)),
        ],
        out_specs=pl.BlockSpec((pl.Squeezed(), NC, tm), lambda b, j: (b, 0, j)),
        compiler_params=pltpu.CompilerParams(
            dimension_semantics=("parallel", "parallel"),
            vmem_limit_bytes=vmem_limit),
    )(patches, t_norm, wc, bc)


# ------------------- glue: im2col (plain JAX reshapes/slices) ----------------
def im2col_channel_major(x, kh, kw, stride, pad):
    """Return patches as (B, C*kh*kw, OH*OW) — channel-major, NO transpose."""
    B, C, H, W = x.shape
    xp = jnp.pad(x, ((0, 0), (0, 0), (pad, pad), (pad, pad)))
    OH = (H + 2 * pad - kh) // stride + 1
    OW = (W + 2 * pad - kw) // stride + 1
    cols = []
    for i in range(kh):
        for j in range(kw):
            cols.append(xp[:, :, i:i + stride * OH:stride, j:j + stride * OW:stride])
    patches = jnp.stack(cols, axis=2)                     # (B, C, kh*kw, OH, OW)
    patches = patches.reshape(B, C * kh * kw, OH * OW)    # row index = c*9 + k
    return patches, OH, OW


def model_exporter_forward(x, txt_feats, params, *, tm=2048,
                           out_dtype=jnp.float32):
    """x: (B, 3, H, W) float32 NCHW;  txt_feats: (B, NC, 512) float32.

    out_dtype=jnp.bfloat16 halves logit writeback traffic (useful on v5e when
    NC is large and the downstream decode tolerates bf16).
    """
    B = x.shape[0]
    NC = txt_feats.shape[1]

    patches, OH, OW = im2col_channel_major(x, KH, KW, STRIDE, PAD)  # (B,27,HW)
    HW = OH * OW

    # Pad HW to a multiple of 128 so every output store is unmasked/lane-dense
    # and the tile picker always finds a multiple-of-128 divisor.
    pad_hw = (-HW) % 128
    if pad_hw:
        patches = jnp.pad(patches, ((0, 0), (0, 0), (0, pad_hw)))
    HWp = HW + pad_hw
    tm_eff = _pick_tile(HWp, tm, B)

    # Text branch hoisted out of the kernel: batch-invariant across HW tiles.
    t = txt_feats @ params["txt_w"] + params["txt_b"]               # (B,NC,CEMB)
    t = t / jnp.sqrt(jnp.sum(t * t, axis=-1, keepdims=True) + 1e-12)

    # bf16 for every HBM-fed matmul operand; f32 epilogues inside the kernel.
    patches = patches.astype(jnp.bfloat16)
    t_norm = t.astype(jnp.bfloat16)
    wc = params["conv_w"].reshape(CEMB, K27).astype(jnp.bfloat16)   # (CEMB, 27)
    bc = params["conv_b"].reshape(CEMB, 1).astype(jnp.float32)

    logits = fused_forward(patches, t_norm, wc, bc,
                           B=B, NC=NC, HW=HWp, tm=tm_eff,
                           out_dtype=out_dtype)                     # (B,NC,HWp)
    # Already channel-major: drop HW padding, plain reshape, no transpose.
    return logits[..., :HW].reshape(B, NC, OH, OW)


def _silu(x):
    return x * jax.nn.sigmoid(x)


def reference_forward(x, txt_feats, params):
    """Pure-JAX f32 reference for correctness checking."""
    B, NC = x.shape[0], txt_feats.shape[1]
    y = jax.lax.conv_general_dilated(
        x, params["conv_w"], window_strides=(STRIDE, STRIDE),
        padding=((PAD, PAD), (PAD, PAD)),
        dimension_numbers=("NCHW", "OIHW", "NCHW"))
    y = _silu(y + params["conv_b"][None, :, None, None])
    Bc, C, OH, OW = y.shape
    f = y.transpose(0, 2, 3, 1).reshape(B, OH * OW, C)
    f = f / jnp.sqrt(jnp.sum(f * f, axis=-1, keepdims=True) + 1e-12)
    t = txt_feats @ params["txt_w"] + params["txt_b"]
    t = t / jnp.sqrt(jnp.sum(t * t, axis=-1, keepdims=True) + 1e-12)
    logits = jnp.einsum("bpc,bnc->bpn", f, t) * LOGIT_SCALE + LOGIT_BIAS
    return logits.transpose(0, 2, 1).reshape(B, NC, OH, OW)


if __name__ == "__main__":
    key = jax.random.PRNGKey(0)
    kx, kt, k1, k2, k3, k4 = jax.random.split(key, 6)

    B, H, W, NUM_CLASSES = 2, 32, 32, 8
    x = jax.random.normal(kx, (B, CIN, H, W), jnp.float32)
    txt_feats = jax.random.normal(kt, (B, NUM_CLASSES, TXT_DIM), jnp.float32)

    # deterministic synthetic parameters (no checkpoint loading)
    params = {
        "conv_w": 0.1 * jax.random.normal(k1, (CEMB, CIN, KH, KW), jnp.float32),
        "conv_b": 0.01 * jax.random.normal(k2, (CEMB,), jnp.float32),
        "txt_w": 0.05 * jax.random.normal(k3, (TXT_DIM, CEMB), jnp.float32),
        "txt_b": 0.01 * jax.random.normal(k4, (CEMB,), jnp.float32),
    }

    out = jax.block_until_ready(model_exporter_forward(x, txt_feats, params))
    assert out.shape == (B, NUM_CLASSES, H // STRIDE, W // STRIDE)

    ref = jax.block_until_ready(reference_forward(x, txt_feats, params))
    # bf16 matmul operands vs f32 reference -> relaxed tolerance
    assert jnp.allclose(out, ref, atol=2e-2, rtol=2e-2), "mismatch vs JAX reference"

    print("KERNEL_OK")
</pallas_src>

<mosaic_0001>
module attributes {stable_mosaic.version = 11 : i64} {
  func.func @fused_kernel(%arg0: i32, %arg1: i32, %arg2: memref<1x27x256xbf16, #tpu.memory_space<vmem>>, %arg3: memref<1x8x64xbf16, #tpu.memory_space<vmem>>, %arg4: memref<64x27xbf16, #tpu.memory_space<vmem>>, %arg5: memref<64x1xf32, #tpu.memory_space<vmem>>, %arg6: memref<1x8x256xf32, #tpu.memory_space<vmem>>) attributes {dimension_semantics = [#tpu.dimension_semantics<parallel>, #tpu.dimension_semantics<parallel>], iteration_bounds = array<i64: 2, 1>, scalar_prefetch = 0 : i64, scratch_operands = 0 : i64, tpu.core_type = #tpu.core_type<tc>, window_params = [{transform_indices = @transform_0, window_bounds = array<i64: 1, 27, 256>}, {transform_indices = @transform_1, window_bounds = array<i64: 1, 8, 64>}, {pipeline_mode = #tpu.pipeline_mode<synchronous>, transform_indices = @transform_2, window_bounds = array<i64: 64, 27>}, {pipeline_mode = #tpu.pipeline_mode<synchronous>, transform_indices = @transform_3, window_bounds = array<i64: 64, 1>}, {transform_indices = @transform_4, window_bounds = array<i64: 1, 8, 256>}]} {
    %c0 = arith.constant 0 : index
    %c0_0 = arith.constant 0 : index
    %0 = vector.load %arg4[%c0, %c0_0] : memref<64x27xbf16, #tpu.memory_space<vmem>>, vector<64x27xbf16>
    %c0_1 = arith.constant 0 : index
    %c0_2 = arith.constant 0 : index
    %c0_3 = arith.constant 0 : index
    %1 = vector.load %arg2[%c0_1, %c0_2, %c0_3] : memref<1x27x256xbf16, #tpu.memory_space<vmem>>, vector<1x27x256xbf16>
    %2 = vector.shape_cast %1 : vector<1x27x256xbf16> to vector<27x256xbf16>
    %cst = arith.constant dense<0.000000e+00> : vector<64x256xf32>
    %3 = tpu.matmul %0, %2, %cst {dimension_numbers = #tpu.dot_dimension_numbers<[1], [0], [0], [1], [0, 0, 1, 1], [], []>} : vector<64x27xbf16>, vector<27x256xbf16>, vector<64x256xf32> -> vector<64x256xf32>
    %c0_4 = arith.constant 0 : index
    %c0_5 = arith.constant 0 : index
    %4 = vector.load %arg5[%c0_4, %c0_5] : memref<64x1xf32, #tpu.memory_space<vmem>>, vector<64x1xf32>
    %5 = vector.broadcast %4 : vector<64x1xf32> to vector<64x256xf32>
    %6 = arith.addf %3, %5 : vector<64x256xf32>
    %7 = arith.negf %6 : vector<64x256xf32>
    %8 = math.exp %7 : vector<64x256xf32>
    %cst_6 = arith.constant 1.000000e+00 : f32
    %9 = vector.broadcast %cst_6 : f32 to vector<64x256xf32>
    %10 = arith.addf %9, %8 : vector<64x256xf32>
    %11 = arith.divf %9, %10 : vector<64x256xf32>
    %12 = arith.mulf %6, %11 : vector<64x256xf32>
    %13 = arith.mulf %12, %12 : vector<64x256xf32>
    %cst_7 = arith.constant dense<0.000000e+00> : vector<256xf32>
    %14 = vector.multi_reduction <add>, %13, %cst_7 [0] : vector<64x256xf32> to vector<256xf32>
    %15 = vector.shape_cast %14 : vector<256xf32> to vector<1x256xf32>
    %cst_8 = arith.constant 9.99999996E-13 : f32
    %16 = vector.broadcast %cst_8 : f32 to vector<1x256xf32>
    %17 = arith.addf %15, %16 : vector<1x256xf32>
    %18 = math.rsqrt %17 : vector<1x256xf32>
    %19 = vector.broadcast %18 : vector<1x256xf32> to vector<64x256xf32>
    %20 = arith.mulf %12, %19 : vector<64x256xf32>
    %c0_9 = arith.constant 0 : index
    %c0_10 = arith.constant 0 : index
    %c0_11 = arith.constant 0 : index
    %21 = vector.load %arg3[%c0_9, %c0_10, %c0_11] : memref<1x8x64xbf16, #tpu.memory_space<vmem>>, vector<1x8x64xbf16>
    %22 = vector.shape_cast %21 : vector<1x8x64xbf16> to vector<8x64xbf16>
    %23 = arith.truncf %20 : vector<64x256xf32> to vector<64x256xbf16>
    %cst_12 = arith.constant dense<0.000000e+00> : vector<8x256xf32>
    %24 = tpu.matmul %22, %23, %cst_12 {dimension_numbers = #tpu.dot_dimension_numbers<[1], [0], [0], [1], [0, 0, 1, 1], [], []>} : vector<8x64xbf16>, vector<64x256xbf16>, vector<8x256xf32> -> vector<8x256xf32>
    %cst_13 = arith.constant 6.250000e-02 : f32
    %25 = vector.broadcast %cst_13 : f32 to vector<8x256xf32>
    %26 = arith.mulf %24, %25 : vector<8x256xf32>
    %cst_14 = arith.constant -1.000000e+00 : f32
    %27 = vector.broadcast %cst_14 : f32 to vector<8x256xf32>
    %28 = arith.addf %26, %27 : vector<8x256xf32>
    %c0_15 = arith.constant 0 : index
    %c0_16 = arith.constant 0 : index
    %c0_17 = arith.constant 0 : index
    %29 = vector.load %arg6[%c0_15, %c0_16, %c0_17] : memref<1x8x256xf32, #tpu.memory_space<vmem>>, vector<1x8x256xf32>
    %30 = vector.shape_cast %29 : vector<1x8x256xf32> to vector<8x256xf32>
    %31 = vector.shape_cast %28 : vector<8x256xf32> to vector<1x8x256xf32>
    tpu.vector_store %arg6[%c0_15, %c0_16, %c0_17], %31 {strides = array<i32>} : memref<1x8x256xf32, #tpu.memory_space<vmem>>, vector<1x8x256xf32>,
    return
  }
  func.func @transform_0(%arg0: i32, %arg1: i32) -> (i32, i32, i32) {
    %c0_i32 = arith.constant 0 : i32
    %c0_i32_0 = arith.constant 0 : i32
    return %arg0, %c0_i32, %arg1 : i32, i32, i32
  }
  func.func @transform_1(%arg0: i32, %arg1: i32) -> (i32, i32, i32) {
    %c0_i32 = arith.constant 0 : i32
    %c0_i32_0 = arith.constant 0 : i32
    %c0_i32_1 = arith.constant 0 : i32
    return %arg0, %c0_i32, %c0_i32_0 : i32, i32, i32
  }
  func.func @transform_2(%arg0: i32, %arg1: i32) -> (i32, i32) {
    %c0_i32 = arith.constant 0 : i32
    %c0_i32_0 = arith.constant 0 : i32
    %c0_i32_1 = arith.constant 0 : i32
    return %c0_i32, %c0_i32_0 : i32, i32
  }
  func.func @transform_3(%arg0: i32, %arg1: i32) -> (i32, i32) {
    %c0_i32 = arith.constant 0 : i32
    %c0_i32_0 = arith.constant 0 : i32
    %c0_i32_1 = arith.constant 0 : i32
    return %c0_i32, %c0_i32_0 : i32, i32
  }
  func.func @transform_4(%arg0: i32, %arg1: i32) -> (i32, i32, i32) {
    %c0_i32 = arith.constant 0 : i32
    %c0_i32_0 = arith.constant 0 : i32
    return %arg0, %c0_i32, %arg1 : i32, i32, i32
  }
}

</mosaic_0001>

<llo_original>
// kernel: tpu_custom_call.1
$region0: #{tpu_custom_call.1}
  #allocation0 [shape = 'u32[]', space=smem, size = 0x4, offset = 0x4, fixed_abs, tag = 'smem constant byte address 0x4 - core index']
  #allocation1 [shape = 'u32[144,128]{1,0:T(1,128)}', space=vmem, size = 0x12000, scoped, tag = 'internal scratch']
  %s0 = inlined_call_operand.vmem [shape: bf16[2,27,256], index: 0, kind: input, shape index: {}]
  %s1 = inlined_call_operand.vmem [shape: bf16[2,8,64], index: 1, kind: input, shape index: {}]
  %s2 = inlined_call_operand.vmem [shape: bf16[64,27], index: 2, kind: input, shape index: {}]
  %s3 = inlined_call_operand.vmem [shape: f32[64,1], index: 3, kind: input, shape index: {}]
  %s4 = inlined_call_operand.hbm [shape: f32[2,8,256], index: 4, kind: output, shape index: {}]
  %s5 = sld [smem:[#allocation0]]
  $region49: #{tpu_custom_call.1} parent=0
    _
  %s7 = ssub.s32 1, %s5
  %s8 = scalar_select 0, %s7, %s5
  $region1: #{tpu_custom_call.1} parent=0
    #allocation2 [shape = 'u8[16384]{0}', space=vmem, size = 0x4000, scoped, tag = 'output window, operand 0']
    #allocation3 [shape = 's32[2]{0}', space=sflag, size = 0x8, scoped, tag = 'scoped memory for tpu_custom_call.1']
    %9 = vsyncpa [#allocation3], 0
    %s10 = scalar_lea.sflag [#allocation3], 1
    %11 = vsyncpa %s10, 0
    loop: start=0, step=1, limit=4
    $region2: #{tpu_custom_call.1} parent=1 // loop_pre_header
      _
    $region3: #{tpu_custom_call.1} parent=1 // loop_header
      %s13 = sphi 0, %s17
      %p14 = scmp.ge.s32.totalorder %s13, 4
      %s20 = sphi 0, %s32
      %s21 = sphi 0, %s28
      %s22 = sphi 0, %s20
      %s23 = sphi 0, %s21
      %s24 = sphi 0, %s22
      %s25 = sphi 0, %s23
      %s37 = sphi 0, %s39
      %s40 = sphi 0, %s37
      %s41 = sphi 0, %s40
      %s57 = sphi 0, %s41
      %s63 = sphi 0, %s65
      %s66 = sphi 0, %s63
      %s67 = sphi 0, %s66
      %s83 = sphi 0, %s67
      %s87 = sphi 0, %s87
      %s89 = sphi 0, %s87
      %s90 = sphi 0, %s89
      %s104 = sphi 0, %s90
      %s108 = sphi 0, %s108
      %s110 = sphi 0, %s108
      %s111 = sphi 0, %s110
      %s125 = sphi 0, %s111
      %s133 = sphi 0, %s135
      %s136 = sphi 0, %s133
      %s137 = sphi 0, %s136
      %s153 = sphi 0, %s137
    $region4: #{tpu_custom_call.1} parent=1 // loop_header_branch
      %16 = sbr.rel (%p14) target = $region8
    $region5: #{tpu_custom_call.1} parent=1 // loop_body
      %s18 = ssub.s32 %s13, 1
      %s19 = ssub.s32 %s13, 2
      %s26 = sadd.s32 1, %s21
      %p27 = scmp.ge.s32.totalorder %s26, 1
      %s28 = scalar_select %p27, 0, %s26
      %s29 = sadd.s32 1, %s20
      %s30 = scalar_select %p27, %s29, %s20
      %p31 = scmp.ge.s32.totalorder %s30, 2
      %s32 = scalar_select %p31, 0, %s30
      %s33 = ssub.s32 %s20, %s32
      %s34 = ssub.s32 %s21, %s28
      %s35 = sor.u32 %s33, %s34
      %p36 = scmp.eq.s32.totalorder %s35, 0
      %s38 = sadd.s32 %s37, 1
      %s39 = scalar_select %p36, %s37, %s38
      %p42 = pneg %p36
      %p43 = scmp.eq.s32.totalorder %s13, 1
      %p44 = por %p42, %p43
      %p45 = scmp.ne.s32.totalorder %s37, %s40
      %p46 = scmp.eq.s32.totalorder %s13, 0
      %p47 = por %p45, %p46
      %p48 = scmp.ne.s32.totalorder %s37, %s40
      %p49 = scmp.eq.s32.totalorder %s18, 1
      %p50 = por %p48, %p49
      %p51 = scmp.ne.s32.totalorder %s40, %s41
      %p52 = scmp.eq.s32.totalorder %s18, 0
      %p53 = por %p51, %p52
      %p54 = scmp.ne.s32.totalorder %s40, %s41
      %p55 = scmp.eq.s32.totalorder %s19, 1
      %p56 = por %p54, %p55
      %p58 = scmp.ne.s32.totalorder %s41, %s57
      %p59 = scmp.eq.s32.totalorder %s19, 0
      %p60 = por %p58, %p59
      %s61 = ssub.s32 %s20, %s32
      %p62 = scmp.eq.s32.totalorder %s61, 0
      %s64 = sadd.s32 %s63, 1
      %s65 = scalar_select %p62, %s63, %s64
      %p68 = pneg %p62
      %p69 = scmp.eq.s32.totalorder %s13, 1
      %p70 = por %p68, %p69
      %p71 = scmp.ne.s32.totalorder %s63, %s66
      %p72 = scmp.eq.s32.totalorder %s13, 0
      %p73 = por %p71, %p72
      %p74 = scmp.ne.s32.totalorder %s63, %s66
      %p75 = scmp.eq.s32.totalorder %s18, 1
      %p76 = por %p74, %p75
      %p77 = scmp.ne.s32.totalorder %s66, %s67
      %p78 = scmp.eq.s32.totalorder %s18, 0
      %p79 = por %p77, %p78
      %p80 = scmp.ne.s32.totalorder %s66, %s67
      %p81 = scmp.eq.s32.totalorder %s19, 1
      %p82 = por %p80, %p81
      %p84 = scmp.ne.s32.totalorder %s67, %s83
      %p85 = scmp.eq.s32.totalorder %s19, 0
      %p86 = por %p84, %p85
      %s88 = sadd.s32 %s87, 1
      %p91 = scmp.eq.s32.totalorder %s13, 1
      %p92 = scmp.ne.s32.totalorder %s87, %s89
      %p93 = scmp.eq.s32.totalorder %s13, 0
      %p94 = por %p92, %p93
      %p95 = scmp.ne.s32.totalorder %s87, %s89
      %p96 = scmp.eq.s32.totalorder %s18, 1
      %p97 = por %p95, %p96
      %p98 = scmp.ne.s32.totalorder %s89, %s90
      %p99 = scmp.eq.s32.totalorder %s18, 0
      %p100 = por %p98, %p99
      %p101 = scmp.ne.s32.totalorder %s89, %s90
      %p102 = scmp.eq.s32.totalorder %s19, 1
      %p103 = por %p101, %p102
      %p105 = scmp.ne.s32.totalorder %s90, %s104
      %p106 = scmp.eq.s32.totalorder %s19, 0
      %p107 = por %p105, %p106
      %s109 = sadd.s32 %s108, 1
      %p112 = scmp.eq.s32.totalorder %s13, 1
      %p113 = scmp.ne.s32.totalorder %s108, %s110
      %p114 = scmp.eq.s32.totalorder %s13, 0
      %p115 = por %p113, %p114
      %p116 = scmp.ne.s32.totalorder %s108, %s110
      %p117 = scmp.eq.s32.totalorder %s18, 1
      %p118 = por %p116, %p117
      %p119 = scmp.ne.s32.totalorder %s110, %s111
      %p120 = scmp.eq.s32.totalorder %s18, 0
      %p121 = por %p119, %p120
      %p122 = scmp.ne.s32.totalorder %s110, %s111
      %p123 = scmp.eq.s32.totalorder %s19, 1
      %p124 = por %p122, %p123
      %p126 = scmp.ne.s32.totalorder %s111, %s125
      %p127 = scmp.eq.s32.totalorder %s19, 0
      %p128 = por %p126, %p127
      %s129 = ssub.s32 %s20, %s32
      %s130 = ssub.s32 %s21, %s28
      %s131 = sor.u32 %s129, %s130
      %p132 = scmp.eq.s32.totalorder %s131, 0
      %s134 = sadd.s32 %s133, 1
      %s135 = scalar_select %p132, %s133, %s134
      %p138 = pneg %p132
      %p139 = scmp.eq.s32.totalorder %s13, 1
      %p140 = por %p138, %p139
      %p141 = scmp.ne.s32.totalorder %s133, %s136
      %p142 = scmp.eq.s32.totalorder %s13, 0
      %p143 = por %p141, %p142
      %p144 = scmp.ne.s32.totalorder %s133, %s136
      %p145 = scmp.eq.s32.totalorder %s18, 1
      %p146 = por %p144, %p145
      %p147 = scmp.ne.s32.totalorder %s136, %s137
      %p148 = scmp.eq.s32.totalorder %s18, 0
      %p149 = por %p147, %p148
      %p150 = scmp.ne.s32.totalorder %s136, %s137
      %p151 = scmp.eq.s32.totalorder %s19, 1
      %p152 = por %p150, %p151
      %p154 = scmp.ne.s32.totalorder %s137, %s153
      %p155 = scmp.eq.s32.totalorder %s19, 0
      %p156 = por %p154, %p155
      %p157 = scmp.le.s32.totalorder 1, %s13
      %p158 = scmp.lt.s32.totalorder %s13, 3
      %p159 = pnand %p157, %p158
      %p160 = pneg %p159
      // Predicated region
      $region9: #{tpu_custom_call.1} parent=5 // pred_check
        _
      $region10: #{tpu_custom_call.1} parent=5 // pred_check_branch
        %162 = sbr.rel (%p159) target = $region12
      $region11: #{tpu_custom_call.1} parent=5 // pred_region
        %s163 = ssub.s32 %s13, 1
        // Predicated region
        $region13: #{tpu_custom_call.1} parent=11 // pred_check
          %p164 = pneg %p100
        $region14: #{tpu_custom_call.1} parent=11 // pred_check_branch
          %166 = sbr.rel (%p164) target = $region16
        $region15: #{tpu_custom_call.1} parent=11 // pred_region
          _
        $region16: #{tpu_custom_call.1} parent=11 // pred_fallthru
          _
        // Predicated region
        $region17: #{tpu_custom_call.1} parent=11 // pred_check
          %p167 = pneg %p121
        $region18: #{tpu_custom_call.1} parent=11 // pred_check_branch
          %169 = sbr.rel (%p167) target = $region20
        $region19: #{tpu_custom_call.1} parent=11 // pred_region
          _
        $region20: #{tpu_custom_call.1} parent=11 // pred_fallthru
          _
      $region12: #{tpu_custom_call.1} parent=5 // pred_fallthru
        _
      %p170 = scmp.lt.s32.totalorder %s13, 2
      // Predicated region
      $region21: #{tpu_custom_call.1} parent=5 // pred_check
        %p171 = pneg %p170
      $region22: #{tpu_custom_call.1} parent=5 // pred_check_branch
        %173 = sbr.rel (%p171) target = $region24
      $region23: #{tpu_custom_call.1} parent=5 // pred_region
        // Predicated region
        $region25: #{tpu_custom_call.1} parent=23 // pred_check
          %p174 = pneg %p47
        $region26: #{tpu_custom_call.1} parent=23 // pred_check_branch
          %176 = sbr.rel (%p174) target = $region28
        $region27: #{tpu_custom_call.1} parent=23 // pred_region
          %s177 = smul.u32 2, %s21
          %p178 = scmp.lt.s32.totalorder %s20, 1
          %s179 = scalar_select %p178, %s20, 1
          %p180 = scmp.lt.s32.totalorder %s177, 1
          %s181 = scalar_select %p180, %s177, 1
          %s182 = smul.addr %s179, 8
          %s183 = sadd.s32 %s181, %s182
          %s184 = smul.addr %s183, 4
          %s185 = scalar_lea.vmem %s0, %s184
          %s186 = smul.u32 2, %s21
        $region28: #{tpu_custom_call.1} parent=23 // pred_fallthru
          _
        // Predicated region
        $region29: #{tpu_custom_call.1} parent=23 // pred_check
          %p187 = pneg %p73
        $region30: #{tpu_custom_call.1} parent=23 // pred_check_branch
          %189 = sbr.rel (%p187) target = $region32
        $region31: #{tpu_custom_call.1} parent=23 // pred_region
          %p190 = scmp.lt.s32.totalorder %s20, 1
          %s191 = scalar_select %p190, %s20, 1
          %s192 = smul.addr %s191, 4
          %s193 = scalar_lea.vmem %s1, %s192
        $region32: #{tpu_custom_call.1} parent=23 // pred_fallthru
          _
      $region24: #{tpu_custom_call.1} parent=5 // pred_fallthru
        _
      %p194 = scmp.le.s32.totalorder 1, %s13
      %p195 = scmp.lt.s32.totalorder %s13, 3
      %p196 = pnand %p194, %p195
      %p197 = pneg %p196
      // Predicated region
      $region33: #{tpu_custom_call.1} parent=5 // pred_check
        _
      $region34: #{tpu_custom_call.1} parent=5 // pred_check_branch
        %199 = sbr.rel (%p196) target = $region36
      $region35: #{tpu_custom_call.1} parent=5 // pred_region
        %s200 = ssub.s32 %s13, 1
        %s201 = smul.u32 2, %s23
        %p202 = scmp.lt.s32.totalorder %s22, 1
        %s203 = scalar_select %p202, %s22, 1
        %p204 = scmp.lt.s32.totalorder %s201, 1
        %s205 = scalar_select %p204, %s201, 1
        %s206 = smul.addr %s203, 8
        %s207 = sadd.s32 %s205, %s206
        %s208 = smul.addr %s207, 4
        %s209 = scalar_lea.vmem %s0, %s208
        %p210 = pneg %p53
        %p211 = pneg %p50
        %p212 = scmp.lt.s32.totalorder %s22, 1
        %s213 = scalar_select %p212, %s22, 1
        %s214 = smul.addr %s213, 4
        %s215 = scalar_lea.vmem %s1, %s214
        %p216 = pneg %p79
        %p217 = pneg %p76
        %p218 = pneg %p100
        %p219 = pneg %p97
        %p220 = pneg %p121
        %p221 = pneg %p118
        %p222 = pneg %p149
        %p223 = pneg %p146
        %s224 = sand.u32 %s136, 1
        %s225 = scalar_lea.sflag [#allocation3], %s224
        %s226 = sand.u32 %s136, 1
        %s227 = smul.addr %s226, 16
        %s228 = scalar_lea.vmem [#allocation2], %s227
        %s229 = smul.u32 2, %s23
        %p230 = scmp.lt.s32.totalorder %s22, 1
        %s231 = scalar_select %p230, %s22, 1
        %p232 = scmp.lt.s32.totalorder %s229, 1
        %s233 = scalar_select %p232, %s229, 1
        %s234 = smul.addr %s231, 8
        %s235 = sadd.s32 %s233, %s234
        %s236 = smul.addr %s235, 4
        %s237 = scalar_lea.vmem %s0, %s236
        %s238 = smul.u32 2, %s23
        %p239 = scmp.lt.s32.totalorder %s22, 1
        %s240 = scalar_select %p239, %s22, 1
        %s241 = smul.addr %s240, 4
        %s242 = scalar_lea.vmem %s1, %s241
        %s243 = smul.u32 2, %s23
        %v245 = vld [vmem:[%s2] sm:$0xf]
        %v246 = vld [vmem:[%s2 + $0x4] sm:$0xf]
        %v247 = vld [vmem:[%s2 + $0x8] sm:$0xf]
        %v248 = vld [vmem:[%s2 + $0xc] sm:$0xf]
        %v249 = vld [vmem:[%s2 + $0x10] sm:$0xf]
        %v250 = vld [vmem:[%s2 + $0x14] sm:$0xf]
        %v251 = vld [vmem:[%s2 + $0x18] sm:$0xf]
        %v252 = vld [vmem:[%s2 + $0x1c] sm:$0xf]
        %v253 = vld [vmem:[%s237] sm:$0xff]
        %v254 = vld [vmem:[%s237 + $0x8] sm:$0xff]
        %v255 = vld [vmem:[%s237 + $0x10] sm:$0xff]
        %v256 = vld [vmem:[%s237 + $0x18] sm:$0x33]
        %v257 = vld [vmem:[%s3] sm:$0xff]
        %v258 = vld [vmem:[%s3 + $0x8] sm:$0xff]
        %v259 = vld [vmem:[%s3 + $0x10] sm:$0xff]
        %v260 = vld [vmem:[%s3 + $0x18] sm:$0xff]
        %v261 = vld [vmem:[%s3 + $0x20] sm:$0xff]
        %v262 = vld [vmem:[%s3 + $0x28] sm:$0xff]
        %v263 = vld [vmem:[%s3 + $0x30] sm:$0xff]
        %v264 = vld [vmem:[%s3 + $0x38] sm:$0xff]
        %266 = vset.pattern.permute.xlu0 0
        %267 = vperm.xlu0 %266, %v257
        %v268 = vpop.permute.xlu0 %267
        %271 = vset.pattern.permute.xlu0 0
        %272 = vperm.xlu0 %271, %v258
        %v273 = vpop.permute.xlu0 %272
        %276 = vset.pattern.permute.xlu0 0
        %277 = vperm.xlu0 %276, %v259
        %v278 = vpop.permute.xlu0 %277
        %281 = vset.pattern.permute.xlu0 0
        %282 = vperm.xlu0 %281, %v260
        %v283 = vpop.permute.xlu0 %282
        %286 = vset.pattern.permute.xlu0 0
        %287 = vperm.xlu0 %286, %v261
        %v288 = vpop.permute.xlu0 %287
        %291 = vset.pattern.permute.xlu0 0
        %292 = vperm.xlu0 %291, %v262
        %v293 = vpop.permute.xlu0 %292
        %296 = vset.pattern.permute.xlu0 0
        %297 = vperm.xlu0 %296, %v263
        %v298 = vpop.permute.xlu0 %297
        %301 = vset.pattern.permute.xlu0 0
        %302 = vperm.xlu0 %301, %v264
        %v303 = vpop.permute.xlu0 %302
        %v313 = vunpack.c.l.b16 %v245
        %v314 = vunpack.c.l.b16 %v246
        %v315 = vunpack.c.l.b16 %v247
        %v316 = vunpack.c.l.b16 %v248
        %v317 = vunpack.c.l.b16 %v249
        %v318 = vunpack.c.l.b16 %v250
        %v319 = vunpack.c.l.b16 %v251
        %v320 = vunpack.c.l.b16 %v252
        %v321 = vpack.c.b16 %v314, %v313
        %v322 = vpack.c.b16 %v316, %v315
        %v323 = vpack.c.b16 %v318, %v317
        %v324 = vpack.c.b16 %v320, %v319
        %v329 = vunpack.c.l.b16 %v253
        %v330 = vunpack.c.h.b16 %v253
        %v331 = vunpack.c.l.b16 %v254
        %v332 = vunpack.c.h.b16 %v254
        %v333 = vunpack.c.l.b16 %v255
        %v334 = vunpack.c.h.b16 %v255
        %v335 = vunpack.c.l.b16 %v256
        %v336 = vunpack.c.h.b16 %v256
        %v337 = vpack.c.b16 %v331, %v329
        %v338 = vpack.c.b16 %v332, %v330
        %v339 = vpack.c.b16 %v335, %v333
        %v340 = vpack.c.b16 %v336, %v334
        %vm343 = vcmask 220160
        %v345 = vsel %vm343, %v321, 0
        %v348 = vsel %vm343, %v322, 0
        %v351 = vsel %vm343, %v323, 0
        %v354 = vsel %vm343, %v324, 0
        %vm356 = vcmask 1044480
        %vm357 = vcmask 1045504
        %v358 = vsel %vm356, 4294967295, 65535
        %v359 = vsel %vm357, %v358, 0
        %v361 = vand.u32 %v339, %v359
        %v364 = vand.u32 %v340, %v359
        %366 = vmatprep.subr.bf16.mxu0 %v338
        %367 = vmatpush1.bf16.msra.mxu0 %v337
        %368 = vmatprep.subr.bf16.mxu0 %v364
        %369 = vmatpush1.bf16.msra.mxu0 %v361
        %370 = vmatprep.subr.bf16.mxu0 0
        %371 = vmatpush1.bf16.msra.mxu0 0
        %372 = vmatprep.subr.bf16.mxu0 0
        %373 = vmatpush1.bf16.msra.mxu0 0
        %374 = vmatprep.subr.bf16.mxu0 0
        %375 = vmatpush1.bf16.msra.mxu0 0
        %376 = vmatprep.subr.bf16.mxu0 0
        %377 = vmatpush1.bf16.msra.mxu0 0
        %378 = vmatprep.subr.bf16.mxu0 0
        %379 = vmatpush1.bf16.msra.mxu0 0
        %380 = vmatprep.subr.bf16.mxu0 0
        %381 = vmatpush1.bf16.msra.mxu0 0
        %382 = vmatprep.subr.bf16.mxu0 0
        %383 = vmatpush1.bf16.msra.mxu0 0
        %384 = vmatprep.subr.bf16.mxu0 0
        %385 = vmatpush1.bf16.msra.mxu0 0
        %386 = vmatprep.subr.bf16.mxu0 0
        %387 = vmatpush1.bf16.msra.mxu0 0
        %388 = vmatprep.subr.bf16.mxu0 0
        %389 = vmatpush1.bf16.msra.mxu0 0
        %390 = vmatprep.subr.bf16.mxu0 0
        %391 = vmatpush1.bf16.msra.mxu0 0
        %392 = vmatprep.subr.bf16.mxu0 0
        %393 = vmatpush1.bf16.msra.mxu0 0
        %394 = vmatprep.subr.bf16.mxu0 0
        %395 = vmatpush1.bf16.msra.mxu0 0
        %396 = vmatprep.subr.bf16.mxu0 0
        %397 = vmatpush1.bf16.msra.mxu0 0
        %398 = vmatprep.mubr.bf16.mxu0 0
        %399 = vmatmul.mubr.bf16.gmra.mrb[0].mxu0 %v345
        %v400 = vpop.f32.mrb[0].mxu0
        %v401 = vadd.f32 %v268, %v400
        %v402 = vpop.f32.mrb[0].mxu0
        %v403 = vadd.f32 %v268, %v402
        %v404 = vpop.f32.mrb[0].mxu0
        %v405 = vadd.f32 %v273, %v404
        %v406 = vpop.f32.mrb[0].mxu0
        %v407 = vadd.f32 %v273, %v406
        %408 = vmatprep.mubr.bf16.mxu0 0
        %409 = vmatmul.mubr.bf16.gmra.mrb[0].mxu0 %v348
        %v410 = vpop.f32.mrb[0].mxu0
        %v411 = vadd.f32 %v278, %v410
        %v412 = vpop.f32.mrb[0].mxu0
        %v413 = vadd.f32 %v278, %v412
        %v414 = vpop.f32.mrb[0].mxu0
        %v415 = vadd.f32 %v283, %v414
        %v416 = vpop.f32.mrb[0].mxu0
        %v417 = vadd.f32 %v283, %v416
        %418 = vmatprep.mubr.bf16.mxu0 0
        %419 = vmatmul.mubr.bf16.gmra.mrb[0].mxu0 %v351
        %v420 = vpop.f32.mrb[0].mxu0
        %v421 = vadd.f32 %v288, %v420
        %v422 = vpop.f32.mrb[0].mxu0
        %v423 = vadd.f32 %v288, %v422
        %v424 = vpop.f32.mrb[0].mxu0
        %v425 = vadd.f32 %v293, %v424
        %v426 = vpop.f32.mrb[0].mxu0
        %v427 = vadd.f32 %v293, %v426
        %428 = vmatprep.mubr.bf16.mxu0 0
        %429 = vmatmul.mubr.bf16.gmra.mrb[0].mxu0 %v354
        %v430 = vpop.f32.mrb[0].mxu0
        %v431 = vadd.f32 %v298, %v430
        %v432 = vpop.f32.mrb[0].mxu0
        %v433 = vadd.f32 %v298, %v432
        %v434 = vpop.f32.mrb[0].mxu0
        %v435 = vadd.f32 %v303, %v434
        %v436 = vpop.f32.mrb[0].mxu0
        %v437 = vadd.f32 %v303, %v436
        %438 = vdwg.mxu0
        %v439 = vxor.u32 %v401, 2147483648
        %v440 = vxor.u32 %v403, 2147483648
        %v441 = vxor.u32 %v405, 2147483648
        %v442 = vxor.u32 %v407, 2147483648
        %v443 = vxor.u32 %v411, 2147483648
        %v444 = vxor.u32 %v413, 2147483648
        %v445 = vxor.u32 %v415, 2147483648
        %v446 = vxor.u32 %v417, 2147483648
        %v447 = vxor.u32 %v421, 2147483648
        %v448 = vxor.u32 %v423, 2147483648
        %v449 = vxor.u32 %v425, 2147483648
        %v450 = vxor.u32 %v427, 2147483648
        %v451 = vxor.u32 %v431, 2147483648
        %v452 = vxor.u32 %v433, 2147483648
        %v453 = vxor.u32 %v435, 2147483648
        %v454 = vxor.u32 %v437, 2147483648
        %v455 = vmul.f32 %v439, 1.442695
        %v456 = vpow.pop %v455
        %v457 = vmul.f32 %v440, 1.442695
        %v458 = vpow.pop %v457
        %v459 = vmul.f32 %v441, 1.442695
        %v460 = vpow.pop %v459
        %v461 = vmul.f32 %v442, 1.442695
        %v462 = vpow.pop %v461
        %v463 = vmul.f32 %v443, 1.442695
        %v464 = vpow.pop %v463
        %v465 = vmul.f32 %v444, 1.442695
        %v466 = vpow.pop %v465
        %v467 = vmul.f32 %v445, 1.442695
        %v468 = vpow.pop %v467
        %v469 = vmul.f32 %v446, 1.442695
        %v470 = vpow.pop %v469
        %v471 = vmul.f32 %v447, 1.442695
        %v472 = vpow.pop %v471
        %v473 = vmul.f32 %v448, 1.442695
        %v474 = vpow.pop %v473
        %v475 = vmul.f32 %v449, 1.442695
        %v476 = vpow.pop %v475
        %v477 = vmul.f32 %v450, 1.442695
        %v478 = vpow.pop %v477
        %v479 = vmul.f32 %v451, 1.442695
        %v480 = vpow.pop %v479
        %v481 = vmul.f32 %v452, 1.442695
        %v482 = vpow.pop %v481
        %v483 = vmul.f32 %v453, 1.442695
        %v484 = vpow.pop %v483
        %v485 = vmul.f32 %v454, 1.442695
        %v486 = vpow.pop %v485
        %v487 = vadd.f32 %v456, 1.0
        %v488 = vadd.f32 %v458, 1.0
        %v489 = vadd.f32 %v460, 1.0
        %v490 = vadd.f32 %v462, 1.0
        %v491 = vadd.f32 %v464, 1.0
        %v492 = vadd.f32 %v466, 1.0
        %v493 = vadd.f32 %v468, 1.0
        %v494 = vadd.f32 %v470, 1.0
        %v495 = vadd.f32 %v472, 1.0
        %v496 = vadd.f32 %v474, 1.0
        %v497 = vadd.f32 %v476, 1.0
        %v498 = vadd.f32 %v478, 1.0
        %v499 = vadd.f32 %v480, 1.0
        %v500 = vadd.f32 %v482, 1.0
        %v501 = vadd.f32 %v484, 1.0
        %v502 = vadd.f32 %v486, 1.0
        %v503 = vrcp.pop %v487
        %v504 = vmul.f32 1.0, %v503
        %v505 = vrcp.pop %v488
        %v506 = vmul.f32 1.0, %v505
        %v507 = vrcp.pop %v489
        %v508 = vmul.f32 1.0, %v507
        %v509 = vrcp.pop %v490
        %v510 = vmul.f32 1.0, %v509
        %v511 = vrcp.pop %v491
        %v512 = vmul.f32 1.0, %v511
        %v513 = vrcp.pop %v492
        %v514 = vmul.f32 1.0, %v513
        %v515 = vrcp.pop %v493
        %v516 = vmul.f32 1.0, %v515
        %v517 = vrcp.pop %v494
        %v518 = vmul.f32 1.0, %v517
        %v519 = vrcp.pop %v495
        %v520 = vmul.f32 1.0, %v519
        %v521 = vrcp.pop %v496
        %v522 = vmul.f32 1.0, %v521
        %v523 = vrcp.pop %v497
        %v524 = vmul.f32 1.0, %v523
        %v525 = vrcp.pop %v498
        %v526 = vmul.f32 1.0, %v525
        %v527 = vrcp.pop %v499
        %v528 = vmul.f32 1.0, %v527
        %v529 = vrcp.pop %v500
        %v530 = vmul.f32 1.0, %v529
        %v531 = vrcp.pop %v501
        %v532 = vmul.f32 1.0, %v531
        %v533 = vrcp.pop %v502
        %v534 = vmul.f32 1.0, %v533
        %v535 = vmul.f32 %v401, %v504
        %v536 = vmul.f32 %v403, %v506
        %v537 = vmul.f32 %v405, %v508
        %v538 = vmul.f32 %v407, %v510
        %v539 = vmul.f32 %v411, %v512
        %v540 = vmul.f32 %v413, %v514
        %v541 = vmul.f32 %v415, %v516
        %v542 = vmul.f32 %v417, %v518
        %v543 = vmul.f32 %v421, %v520
        %v544 = vmul.f32 %v423, %v522
        %v545 = vmul.f32 %v425, %v524
        %v546 = vmul.f32 %v427, %v526
        %v547 = vmul.f32 %v431, %v528
        %v548 = vmul.f32 %v433, %v530
        %v549 = vmul.f32 %v435, %v532
        %v550 = vmul.f32 %v437, %v534
        %v551 = vmul.f32 %v535, %v535
        %v552 = vmul.f32 %v536, %v536
        %v553 = vmul.f32 %v537, %v537
        %v554 = vmul.f32 %v538, %v538
        %v555 = vmul.f32 %v539, %v539
        %v556 = vmul.f32 %v540, %v540
        %v557 = vmul.f32 %v541, %v541
        %v558 = vmul.f32 %v542, %v542
        %v559 = vmul.f32 %v543, %v543
        %v560 = vmul.f32 %v544, %v544
        %v561 = vmul.f32 %v545, %v545
        %v562 = vmul.f32 %v546, %v546
        %v563 = vmul.f32 %v547, %v547
        %v564 = vmul.f32 %v548, %v548
        %v565 = vmul.f32 %v549, %v549
        %v566 = vmul.f32 %v550, %v550
        %v567 = vadd.f32 %v551, %v553
        %v568 = vadd.f32 %v567, %v555
        %v569 = vadd.f32 %v568, %v557
        %v570 = vadd.f32 %v569, %v559
        %v571 = vadd.f32 %v570, %v561
        %v572 = vadd.f32 %v571, %v563
        %v573 = vadd.f32 %v572, %v565
        %v574 = vrot.slane %v573, 4
        %v575 = vadd.f32 %v573, %v574
        %v576 = vrot.slane %v575, 2
        %v577 = vadd.f32 %v575, %v576
        %v578 = vrot.slane %v577, 1
        %v579 = vadd.f32 %v577, %v578
        %v580 = vadd.f32 %v552, %v554
        %v581 = vadd.f32 %v580, %v556
        %v582 = vadd.f32 %v581, %v558
        %v583 = vadd.f32 %v582, %v560
        %v584 = vadd.f32 %v583, %v562
        %v585 = vadd.f32 %v584, %v564
        %v586 = vadd.f32 %v585, %v566
        %v587 = vrot.slane %v586, 4
        %v588 = vadd.f32 %v586, %v587
        %v589 = vrot.slane %v588, 2
        %v590 = vadd.f32 %v588, %v589
        %v591 = vrot.slane %v590, 1
        %v592 = vadd.f32 %v590, %v591
        %v593 = vadd.f32 %v579, 1e-12
        %v594 = vadd.f32 %v592, 1e-12
        %v595 = vrsqrt.pop %v593
        %v596 = vrsqrt.pop %v594
        %v597 = vmul.f32 %v535, %v595
        %v598 = vmul.f32 %v536, %v596
        %v599 = vmul.f32 %v537, %v595
        %v600 = vmul.f32 %v538, %v596
        %v601 = vmul.f32 %v539, %v595
        %v602 = vmul.f32 %v540, %v596
        %v603 = vmul.f32 %v541, %v595
        %v604 = vmul.f32 %v542, %v596
        %v605 = vmul.f32 %v543, %v595
        %v606 = vmul.f32 %v544, %v596
        %v607 = vmul.f32 %v545, %v595
        %v608 = vmul.f32 %v546, %v596
        %v609 = vmul.f32 %v547, %v595
        %v610 = vmul.f32 %v548, %v596
        %v611 = vmul.f32 %v549, %v595
        %v612 = vmul.f32 %v550, %v596
        %v613 = vld [vmem:[%s242] sm:$0xf]
        %v614 = vpack.c.bf16 %v599, %v597
        %v615 = vpack.c.bf16 %v600, %v598
        %v616 = vpack.c.bf16 %v603, %v601
        %v617 = vpack.c.bf16 %v604, %v602
        %v618 = vpack.c.bf16 %v607, %v605
        %v619 = vpack.c.bf16 %v608, %v606
        %v620 = vpack.c.bf16 %v611, %v609
        %v621 = vpack.c.bf16 %v612, %v610
        %vm622 = vcmask 523264
        %v624 = vsel %vm622, %v613, 0
        %626 = vmatprep.subr.bf16.mxu0 %v615
        %627 = vmatpush1.bf16.msra.mxu0 %v614
        %628 = vmatprep.subr.bf16.mxu0 %v617
        %629 = vmatpush1.bf16.msra.mxu0 %v616
        %630 = vmatprep.subr.bf16.mxu0 %v619
        %631 = vmatpush1.bf16.msra.mxu0 %v618
        %632 = vmatprep.subr.bf16.mxu0 %v621
        %633 = vmatpush1.bf16.msra.mxu0 %v620
        %634 = vmatprep.subr.bf16.mxu0 0
        %635 = vmatpush1.bf16.msra.mxu0 0
        %636 = vmatprep.subr.bf16.mxu0 0
        %637 = vmatpush1.bf16.msra.mxu0 0
        %638 = vmatprep.subr.bf16.mxu0 0
        %639 = vmatpush1.bf16.msra.mxu0 0
        %640 = vmatprep.subr.bf16.mxu0 0
        %641 = vmatpush1.bf16.msra.mxu0 0
        %642 = vmatprep.subr.bf16.mxu0 0
        %643 = vmatpush1.bf16.msra.mxu0 0
        %644 = vmatprep.subr.bf16.mxu0 0
        %645 = vmatpush1.bf16.msra.mxu0 0
        %646 = vmatprep.subr.bf16.mxu0 0
        %647 = vmatpush1.bf16.msra.mxu0 0
        %648 = vmatprep.subr.bf16.mxu0 0
        %649 = vmatpush1.bf16.msra.mxu0 0
        %650 = vmatprep.subr.bf16.mxu0 0
        %651 = vmatpush1.bf16.msra.mxu0 0
        %652 = vmatprep.subr.bf16.mxu0 0
        %653 = vmatpush1.bf16.msra.mxu0 0
        %654 = vmatprep.subr.bf16.mxu0 0
        %655 = vmatpush1.bf16.msra.mxu0 0
        %656 = vmatprep.subr.bf16.mxu0 0
        %657 = vmatpush1.bf16.msra.mxu0 0
        %658 = vmatprep.mubr.bf16.mxu0 0
        %659 = vmatmul.mubr.bf16.gmra.mrb[0].mxu0 %v624
        %v660 = vpop.f32.mrb[0].mxu0
        %v661 = vadd.f32 0.0, %v660
        %v662 = vpop.f32.mrb[0].mxu0
        %v663 = vadd.f32 0.0, %v662
        %v664 = vpop.f32.mrb[0].mxu0
        %v665 = vpop.f32.mrb[0].mxu0
        %666 = vdwg.mxu0
        %v667 = vmul.f32 %v661, 0.0625
        %v668 = vmul.f32 %v663, 0.0625
        %v669 = vadd.f32 %v667, -1.0
        %v670 = vadd.f32 %v668, -1.0
        %671 = vst [vmem:[%s228] sm:$0xff] %v669
        %672 = vst [vmem:[%s228 + $0x8] sm:$0xff] %v670
        %s673 = sand.u32 %s136, 1
        %s674 = scalar_lea.sflag [#allocation3], %s673
        %s675 = sand.u32 %s136, 1
        %s676 = smul.addr %s675, 16
        %s677 = scalar_lea.vmem [#allocation2], %s676
        // Predicated region
        $region37: #{tpu_custom_call.1} parent=35 // pred_check
          %p678 = pneg %p146
        $region38: #{tpu_custom_call.1} parent=35 // pred_check_branch
          %680 = sbr.rel (%p678) target = $region40
        $region39: #{tpu_custom_call.1} parent=35 // pred_region
          %s681 = smul.u32 2, %s23
          %s683 = ssub.s32 256, 256
          %684 = vsyncadd %s674, %s683
          %s685 = smul.addr %s22, 2
          %s686 = sadd.s32 %s681, %s685
          %s687 = smul.addr %s686, 128
          %s688 = scalar_lea.hbm %s4, %s687
          %s690 = sshll.u32 %s677, 4
          %s691 = int_to_ptr.vmem [resolvable:$true] %s690
          %693 = dma.vmem_to_hbm [thread:$0]  %s691, 256, %s688, %s674
        $region40: #{tpu_custom_call.1} parent=35 // pred_fallthru
          _
      $region36: #{tpu_custom_call.1} parent=5 // pred_fallthru
        _
      %p694 = scmp.le.s32.totalorder 2, %s13
      // Predicated region
      $region41: #{tpu_custom_call.1} parent=5 // pred_check
        %p695 = pneg %p694
      $region42: #{tpu_custom_call.1} parent=5 // pred_check_branch
        %697 = sbr.rel (%p695) target = $region44
      $region43: #{tpu_custom_call.1} parent=5 // pred_region
        %s698 = ssub.s32 %s13, 2
        // Predicated region
        $region45: #{tpu_custom_call.1} parent=43 // pred_check
          %p699 = pneg %p152
        $region46: #{tpu_custom_call.1} parent=43 // pred_check_branch
          %701 = sbr.rel (%p699) target = $region48
        $region47: #{tpu_custom_call.1} parent=43 // pred_region
          %s702 = sand.u32 %s137, 1
          %s703 = scalar_lea.sflag [#allocation3], %s702
          %s704 = sand.u32 %s137, 1
          %s705 = smul.addr %s704, 16
          %s706 = scalar_lea.vmem [#allocation2], %s705
          %707 = dma.done %s703, 256
        $region48: #{tpu_custom_call.1} parent=43 // pred_fallthru
          _
      $region44: #{tpu_custom_call.1} parent=5 // pred_fallthru
        _
    $region6: #{tpu_custom_call.1} parent=1 // loop_footer
      %s17 = sadd.s32 1, %s13
    $region7: #{tpu_custom_call.1} parent=1 // loop_footer_branch
      %12 = sbr.rel target = $region3
    $region8: #{tpu_custom_call.1} parent=1 // loop_exit
      _
    %708 = vsyncpa [#allocation3], 1
    %s709 = scalar_lea.sflag [#allocation3], 1
    %710 = vsyncpa %s709, 1

</llo_original>
